<compile_context>
chip_gen: v6e
topology: v6e:2x2x1
jax: 0.10.0
libtpu: 0.0.40
codegen_flags: <defaults>
</compile_context>

<pallas_src>
import functools
import math

import jax
import jax.numpy as jnp
from jax.experimental import pallas as pl
from jax.experimental.pallas import tpu as pltpu

BN_EPS = 1e-5
_VMEM_BUDGET = 20 * 1024 * 1024   # conservative per-step working-set target


def _round_up(a, b):
    return (a + b - 1) // b * b


def _cdiv(a, b):
    return (a + b - 1) // b


def _conv_bn_relu_kernel(x_ref, w_ref, shift_ref, o_ref, acc_ref, *, s, ow):
    """One grid step (n, oh_tile, cout_tile, i): accumulate kernel-row i.

    x_ref:     (1, TH, Wp, Cin) bf16 -- input rows pre-shifted by kernel row i
    w_ref:     (1, k, Cin, TC)  bf16 -- BN-scale-folded weights for row i
    shift_ref: (1, TC)          f32  -- folded conv-bias + BN shift
    o_ref:     (TH*OW, TC)      bf16
    acc_ref:   (TH*OW, TC)      f32  -- VMEM scratch, resident across i
    """
    i = pl.program_id(3)

    @pl.when(i == 0)
    def _init():
        acc_ref[...] = jnp.zeros_like(acc_ref)

    x = x_ref[0]                       # (TH, Wp, Cin)
    w = w_ref[0]                       # (k, Cin, TC)
    th = x.shape[0]
    cin = x.shape[-1]
    k = w.shape[0]

    acc = acc_ref[...]
    for j in range(k):                 # unrolled column shifts (in-VMEM im2col)
        a = x[:, j:j + s * (ow - 1) + 1:s, :]          # (TH, OW, Cin)
        a2 = a.reshape(th * ow, cin)                   # (TM, Cin)
        acc = acc + jnp.dot(a2, w[j], preferred_element_type=jnp.float32)
    acc_ref[...] = acc

    @pl.when(i == pl.num_programs(3) - 1)
    def _finalize():
        y = acc_ref[...] + shift_ref[...]              # (TM, TC) + (1, TC)
        o_ref[...] = jnp.maximum(y, 0.0).astype(o_ref.dtype)


@functools.partial(jax.jit, static_argnames=("k", "s", "p", "block_m", "layout"))
def conv_block_forward(x, params, *, k, s=1, p=0, block_m=512, layout="NCHW"):
    """ConvBlock forward: relu(bn(conv(x))).  x: (N, C_in, H, W) float32.

    BatchNorm uses inference (running-stat) semantics.  layout="NHWC" skips
    the final transpose when the consumer accepts channels-last.
    """
    w = params["conv_w"]            # (C_out, C_in, k, k)
    b = params["conv_b"]            # (C_out,)
    gamma, beta = params["bn_gamma"], params["bn_beta"]
    mean, var = params["bn_mean"], params["bn_var"]

    N, C_in, H, W = x.shape
    C_out = w.shape[0]
    OH = (H + 2 * p - k) // s + 1
    OW = (W + 2 * p - k) // s + 1
    Wp = W + 2 * p

    # Fold BN scale into weights; conv bias + BN mean/beta into one shift.
    scale = gamma * jax.lax.rsqrt(var + BN_EPS)
    shift = (b - mean) * scale + beta

    # ---------------- tile-size selection --------------------------------
    Cp = _round_up(C_out, 128)
    # C_out tile: prefer multiples of 256 (fills v6e/v7x 256x256 MXU), bounded
    # so the weight/output VMEM footprint does not scale with C_out.
    if Cp <= 512:
        TC = Cp
    elif Cp % 512 == 0:
        TC = 512
    elif Cp % 256 == 0:
        TC = 256
    else:
        TC = 128
    n_c = Cp // TC

    align = 8 // math.gcd(OW, 8)          # TH granularity so TH*OW % 8 == 0
    TH = max(1, min(OH, max(1, block_m // OW)))
    TH = min(_round_up(TH, align), _round_up(OH, align))

    # v7x has 2 TensorCores: make sure the "parallel" grid has >=2 steps.
    if N * _cdiv(OH, TH) * n_c < 2 and OH > align:
        TH = min(TH, _round_up(_cdiv(OH, 2), align))

    # Keep the per-step working set inside a conservative VMEM budget
    # (double-buffered operands + the f32 accumulator scratch).
    def vmem_bytes(th):
        x_blk = th * _round_up(Wp, 8) * _round_up(C_in, 128) * 2
        w_blk = k * _round_up(C_in, 8) * TC * 2
        o_blk = th * OW * TC * 2
        acc = th * OW * TC * 4
        return 2 * (x_blk + w_blk + TC * 4 + o_blk) + acc

    while vmem_bytes(TH) > _VMEM_BUDGET and TH > align:
        TH = max(align, _round_up(TH // 2, align))
    vmem_limit = int(min(48 << 20, max(32 << 20, 2 * vmem_bytes(TH))))

    OHp = _round_up(OH, TH)
    n_t = OHp // TH
    TM = TH * OW
    Mp = N * OHp * OW

    # -------- operand prep: NO k^2 im2col, no post-blow-up transpose ------
    x_nhwc = jnp.transpose(x.astype(jnp.bfloat16), (0, 2, 3, 1))  # (N,H,W,Cin)
    x_pad = jnp.pad(x_nhwc, ((0, 0), (p, p), (p, p), (0, 0)))
    # k row-shifted views; the column shifts happen inside the kernel.
    rows = [x_pad[:, i:i + s * (OH - 1) + 1:s, :, :] for i in range(k)]
    x_shift = jnp.stack(rows, axis=1)                  # (N, k, OH, Wp, Cin)
    x_shift = jnp.pad(x_shift, ((0, 0), (0, 0), (0, OHp - OH), (0, 0), (0, 0)))
    x_shift = x_shift.reshape(N * k, OHp, Wp, C_in)

    # (C_out, C_in, k, k) -> (k, k, C_in, Cp), BN scale folded, bf16.
    w_fold = (w * scale[:, None, None, None]).transpose(2, 3, 1, 0)
    w_fold = jnp.pad(w_fold, ((0, 0), (0, 0), (0, 0), (0, Cp - C_out)))
    w_fold = w_fold.astype(jnp.bfloat16)
    shift_p = jnp.pad(shift.astype(jnp.float32).reshape(1, C_out),
                      ((0, 0), (0, Cp - C_out)))

    kernel = functools.partial(_conv_bn_relu_kernel, s=s, ow=OW)
    out = pl.pallas_call(
        kernel,
        out_shape=jax.ShapeDtypeStruct((Mp, Cp), jnp.bfloat16),
        grid_spec=pltpu.PrefetchScalarGridSpec(
            num_scalar_prefetch=0,
            grid=(N, n_t, n_c, k),
            in_specs=[
                pl.BlockSpec((1, TH, Wp, C_in),
                             lambda n, t, c, i: (n * k + i, t, 0, 0)),
                pl.BlockSpec((1, k, C_in, TC),
                             lambda n, t, c, i: (i, 0, 0, c)),
                pl.BlockSpec((1, TC), lambda n, t, c, i: (0, c)),
            ],
            out_specs=pl.BlockSpec((TM, TC),
                                   lambda n, t, c, i: (n * n_t + t, c)),
            scratch_shapes=[pltpu.VMEM((TM, TC), jnp.float32)],
        ),
        compiler_params=pltpu.CompilerParams(
            dimension_semantics=("parallel", "parallel", "parallel",
                                 "arbitrary"),
            vmem_limit_bytes=vmem_limit),
    )(x_shift, w_fold, shift_p)

    # (Mp, Cp) bf16 -> (N, OH, OW, C_out); strip padding in bf16.
    out = out.reshape(N, OHp, OW, Cp)[:, :OH, :, :C_out]
    if layout == "NHWC":
        return out.astype(jnp.float32)
    return out.transpose(0, 3, 1, 2).astype(jnp.float32)


def _reference_forward(x, params, *, k, s, p):
    """Pure-JAX f32 reference (lax conv) for the correctness check."""
    y = jax.lax.conv_general_dilated(
        x, params["conv_w"], window_strides=(s, s),
        padding=[(p, p), (p, p)],
        dimension_numbers=("NCHW", "OIHW", "NCHW"))
    y = y + params["conv_b"][None, :, None, None]
    inv = jax.lax.rsqrt(params["bn_var"] + BN_EPS)
    y = (y - params["bn_mean"][None, :, None, None]) \
        * (params["bn_gamma"] * inv)[None, :, None, None] \
        + params["bn_beta"][None, :, None, None]
    return jnp.maximum(y, 0.0)


def init_params(key, in_c, out_c, k):
    ks = jax.random.split(key, 6)
    return {
        "conv_w": 0.1 * jax.random.normal(ks[0], (out_c, in_c, k, k), jnp.float32),
        "conv_b": 0.1 * jax.random.normal(ks[1], (out_c,), jnp.float32),
        "bn_gamma": 1.0 + 0.1 * jax.random.normal(ks[2], (out_c,), jnp.float32),
        "bn_beta": 0.1 * jax.random.normal(ks[3], (out_c,), jnp.float32),
        "bn_mean": 0.1 * jax.random.normal(ks[4], (out_c,), jnp.float32),
        "bn_var": 0.5 + jnp.abs(jax.random.normal(ks[5], (out_c,), jnp.float32)),
    }


def _check(x, params, *, k, s, p, block_m):
    y = conv_block_forward(x, params, k=k, s=s, p=p, block_m=block_m)
    y = jax.block_until_ready(y)
    y_ref = _reference_forward(x, params, k=k, s=s, p=p)
    assert y.shape == y_ref.shape, (y.shape, y_ref.shape)
    # bf16 operands + bf16 output with f32 accumulation => loose tolerance.
    err = float(jnp.max(jnp.abs(y - y_ref)))
    assert jnp.allclose(y, y_ref, atol=6e-2, rtol=6e-2), (
        "mismatch vs reference; max abs err = %e" % err)


if __name__ == "__main__":
    key = jax.random.PRNGKey(0)
    kx, kp, kx2, kp2 = jax.random.split(key, 4)

    # Main check: ConvBlock(in_c=4, out_c=8, k=3, s=1, p=1) on (2, 4, 16, 16).
    # block_m=128 forces multiple OH tiles so the multi-step pipeline runs.
    N, C_in, H, W = 2, 4, 16, 16
    C_out, k, s, p = 8, 3, 1, 1
    x = jax.random.normal(kx, (N, C_in, H, W), jnp.float32)
    params = init_params(kp, C_in, C_out, k)
    _check(x, params, k=k, s=s, p=p, block_m=128)

    # Secondary check: 1x1 ConvBlock (PCB-style dim-reduce) on (2, 32, 8, 8).
    x2 = jax.random.normal(kx2, (2, 32, 8, 8), jnp.float32)
    params2 = init_params(kp2, 32, 16, 1)
    _check(x2, params2, k=1, s=1, p=0, block_m=512)

    print("KERNEL_OK")
</pallas_src>

<mosaic_0001>
module attributes {stable_mosaic.version = 11 : i64} {
  func.func @_conv_bn_relu_kernel(%arg0: i32, %arg1: i32, %arg2: i32, %arg3: i32, %arg4: memref<1x8x18x4xbf16, #tpu.memory_space<vmem>>, %arg5: memref<1x3x4x128xbf16, #tpu.memory_space<vmem>>, %arg6: memref<1x128xf32, #tpu.memory_space<vmem>>, %arg7: memref<128x128xbf16, #tpu.memory_space<vmem>>, %arg8: memref<128x128xf32, #tpu.memory_space<vmem>>) attributes {dimension_semantics = [#tpu.dimension_semantics<parallel>, #tpu.dimension_semantics<parallel>, #tpu.dimension_semantics<parallel>, #tpu.dimension_semantics<arbitrary>], iteration_bounds = array<i64: 2, 2, 1, 3>, scalar_prefetch = 0 : i64, scratch_operands = 1 : i64, tpu.core_type = #tpu.core_type<tc>, window_params = [{transform_indices = @transform_0, window_bounds = array<i64: 1, 8, 18, 4>}, {transform_indices = @transform_1, window_bounds = array<i64: 1, 3, 4, 128>}, {transform_indices = @transform_2, window_bounds = array<i64: 1, 128>}, {transform_indices = @transform_3, window_bounds = array<i64: 128, 128>}]} {
    %c0_i32 = arith.constant 0 : i32
    %0 = arith.cmpi eq, %arg3, %c0_i32 : i32
    %1 = arith.extui %0 : i1 to i32
    %c0_i32_0 = arith.constant 0 : i32
    %2 = arith.cmpi ne, %1, %c0_i32_0 : i32
    scf.if %2 {
      %cst_15 = arith.constant 0.000000e+00 : f32
      %30 = vector.broadcast %cst_15 : f32 to vector<128x128xf32>
      %c0_16 = arith.constant 0 : index
      %c0_17 = arith.constant 0 : index
      %31 = vector.load %arg8[%c0_16, %c0_17] : memref<128x128xf32, #tpu.memory_space<vmem>>, vector<128x128xf32>
      tpu.vector_store %arg8[%c0_16, %c0_17], %30 {strides = array<i32>} : memref<128x128xf32, #tpu.memory_space<vmem>>, vector<128x128xf32>,
    } else {
    }
    %c0 = arith.constant 0 : index
    %c0_1 = arith.constant 0 : index
    %c0_2 = arith.constant 0 : index
    %c0_3 = arith.constant 0 : index
    %3 = vector.load %arg4[%c0, %c0_1, %c0_2, %c0_3] : memref<1x8x18x4xbf16, #tpu.memory_space<vmem>>, vector<1x8x18x4xbf16>
    %4 = vector.shape_cast %3 : vector<1x8x18x4xbf16> to vector<8x18x4xbf16>
    %c0_4 = arith.constant 0 : index
    %c0_5 = arith.constant 0 : index
    %c0_6 = arith.constant 0 : index
    %c0_7 = arith.constant 0 : index
    %5 = vector.load %arg5[%c0_4, %c0_5, %c0_6, %c0_7] : memref<1x3x4x128xbf16, #tpu.memory_space<vmem>>, vector<1x3x4x128xbf16>
    %6 = vector.shape_cast %5 : vector<1x3x4x128xbf16> to vector<3x4x128xbf16>
    %c0_8 = arith.constant 0 : index
    %c0_9 = arith.constant 0 : index
    %7 = vector.load %arg8[%c0_8, %c0_9] : memref<128x128xf32, #tpu.memory_space<vmem>>, vector<128x128xf32>
    %8 = vector.extract_strided_slice %4 {offsets = [0, 0, 0], sizes = [8, 16, 4], strides = [1, 1, 1]} : vector<8x18x4xbf16> to vector<8x16x4xbf16>
    %9 = vector.shape_cast %8 : vector<8x16x4xbf16> to vector<128x4xbf16>
    %10 = vector.extract_strided_slice %6 {offsets = [0, 0, 0], sizes = [1, 4, 128], strides = [1, 1, 1]} : vector<3x4x128xbf16> to vector<1x4x128xbf16>
    %11 = vector.shape_cast %10 : vector<1x4x128xbf16> to vector<4x128xbf16>
    %cst = arith.constant dense<0.000000e+00> : vector<128x128xf32>
    %12 = tpu.matmul %9, %11, %cst {dimension_numbers = #tpu.dot_dimension_numbers<[1], [0], [0], [1], [0, 0, 1, 1], [], []>} : vector<128x4xbf16>, vector<4x128xbf16>, vector<128x128xf32> -> vector<128x128xf32>
    %13 = arith.addf %7, %12 : vector<128x128xf32>
    %14 = vector.extract_strided_slice %4 {offsets = [0, 1, 0], sizes = [8, 16, 4], strides = [1, 1, 1]} : vector<8x18x4xbf16> to vector<8x16x4xbf16>
    %15 = vector.shape_cast %14 : vector<8x16x4xbf16> to vector<128x4xbf16>
    %16 = vector.extract_strided_slice %6 {offsets = [1, 0, 0], sizes = [1, 4, 128], strides = [1, 1, 1]} : vector<3x4x128xbf16> to vector<1x4x128xbf16>
    %17 = vector.shape_cast %16 : vector<1x4x128xbf16> to vector<4x128xbf16>
    %cst_10 = arith.constant dense<0.000000e+00> : vector<128x128xf32>
    %18 = tpu.matmul %15, %17, %cst_10 {dimension_numbers = #tpu.dot_dimension_numbers<[1], [0], [0], [1], [0, 0, 1, 1], [], []>} : vector<128x4xbf16>, vector<4x128xbf16>, vector<128x128xf32> -> vector<128x128xf32>
    %19 = arith.addf %13, %18 : vector<128x128xf32>
    %20 = vector.extract_strided_slice %4 {offsets = [0, 2, 0], sizes = [8, 16, 4], strides = [1, 1, 1]} : vector<8x18x4xbf16> to vector<8x16x4xbf16>
    %21 = vector.shape_cast %20 : vector<8x16x4xbf16> to vector<128x4xbf16>
    %22 = vector.extract_strided_slice %6 {offsets = [2, 0, 0], sizes = [1, 4, 128], strides = [1, 1, 1]} : vector<3x4x128xbf16> to vector<1x4x128xbf16>
    %23 = vector.shape_cast %22 : vector<1x4x128xbf16> to vector<4x128xbf16>
    %cst_11 = arith.constant dense<0.000000e+00> : vector<128x128xf32>
    %24 = tpu.matmul %21, %23, %cst_11 {dimension_numbers = #tpu.dot_dimension_numbers<[1], [0], [0], [1], [0, 0, 1, 1], [], []>} : vector<128x4xbf16>, vector<4x128xbf16>, vector<128x128xf32> -> vector<128x128xf32>
    %25 = arith.addf %19, %24 : vector<128x128xf32>
    %c0_12 = arith.constant 0 : index
    %c0_13 = arith.constant 0 : index
    %26 = vector.load %arg8[%c0_12, %c0_13] : memref<128x128xf32, #tpu.memory_space<vmem>>, vector<128x128xf32>
    tpu.vector_store %arg8[%c0_12, %c0_13], %25 {strides = array<i32>} : memref<128x128xf32, #tpu.memory_space<vmem>>, vector<128x128xf32>,
    %c2_i32 = arith.constant 2 : i32
    %27 = arith.cmpi eq, %arg3, %c2_i32 : i32
    %28 = arith.extui %27 : i1 to i32
    %c0_i32_14 = arith.constant 0 : i32
    %29 = arith.cmpi ne, %28, %c0_i32_14 : i32
    scf.if %29 {
      %c0_15 = arith.constant 0 : index
      %c0_16 = arith.constant 0 : index
      %30 = vector.load %arg8[%c0_15, %c0_16] : memref<128x128xf32, #tpu.memory_space<vmem>>, vector<128x128xf32>
      %c0_17 = arith.constant 0 : index
      %c0_18 = arith.constant 0 : index
      %31 = vector.load %arg6[%c0_17, %c0_18] : memref<1x128xf32, #tpu.memory_space<vmem>>, vector<1x128xf32>
      %32 = vector.broadcast %31 : vector<1x128xf32> to vector<128x128xf32>
      %33 = arith.addf %30, %32 : vector<128x128xf32>
      %cst_19 = arith.constant 0.000000e+00 : f32
      %34 = vector.broadcast %cst_19 : f32 to vector<128x128xf32>
      %35 = arith.maximumf %33, %34 : vector<128x128xf32>
      %36 = arith.truncf %35 : vector<128x128xf32> to vector<128x128xbf16>
      %c0_20 = arith.constant 0 : index
      %c0_21 = arith.constant 0 : index
      %37 = vector.load %arg7[%c0_20, %c0_21] : memref<128x128xbf16, #tpu.memory_space<vmem>>, vector<128x128xbf16>
      tpu.vector_store %arg7[%c0_20, %c0_21], %36 {strides = array<i32>} : memref<128x128xbf16, #tpu.memory_space<vmem>>, vector<128x128xbf16>,
    } else {
    }
    return
  }
  func.func @transform_0(%arg0: i32, %arg1: i32, %arg2: i32, %arg3: i32) -> (i32, i32, i32, i32) {
    %c3_i32 = arith.constant 3 : i32
    %0 = arith.muli %arg0, %c3_i32 : i32
    %1 = arith.addi %0, %arg3 : i32
    %c0_i32 = arith.constant 0 : i32
    %c0_i32_0 = arith.constant 0 : i32
    %c0_i32_1 = arith.constant 0 : i32
    return %1, %arg1, %c0_i32, %c0_i32_0 : i32, i32, i32, i32
  }
  func.func @transform_1(%arg0: i32, %arg1: i32, %arg2: i32, %arg3: i32) -> (i32, i32, i32, i32) {
    %c0_i32 = arith.constant 0 : i32
    %c0_i32_0 = arith.constant 0 : i32
    %c0_i32_1 = arith.constant 0 : i32
    return %arg3, %c0_i32, %c0_i32_0, %arg2 : i32, i32, i32, i32
  }
  func.func @transform_2(%arg0: i32, %arg1: i32, %arg2: i32, %arg3: i32) -> (i32, i32) {
    %c0_i32 = arith.constant 0 : i32
    %c0_i32_0 = arith.constant 0 : i32
    return %c0_i32, %arg2 : i32, i32
  }
  func.func @transform_3(%arg0: i32, %arg1: i32, %arg2: i32, %arg3: i32) -> (i32, i32) {
    %c2_i32 = arith.constant 2 : i32
    %0 = arith.muli %arg0, %c2_i32 : i32
    %1 = arith.addi %0, %arg1 : i32
    %c0_i32 = arith.constant 0 : i32
    return %1, %arg2 : i32, i32
  }
}

</mosaic_0001>

<llo_original>
// kernel: conv_block_forward.1
$region0: #{conv_block_forward.1}
  #allocation0 [shape = 'u32[]', space=smem, size = 0x4, offset = 0x4, fixed_abs, tag = 'smem constant byte address 0x4 - core index']
  #allocation1 [shape = 'u32[144,128]{1,0:T(1,128)}', space=vmem, size = 0x12000, scoped, tag = 'internal scratch']
  #allocation2 [shape = 'f32[128,128]{1,0:T(8,128)}', space=vmem, size = 0x10000, scoped, tag = 'scratch operand']
  %s0 = inlined_call_operand.vmem [shape: bf16[6,16,18,4], index: 0, kind: input, shape index: {}]
  %s1 = inlined_call_operand.vmem [shape: bf16[3,3,4,128], index: 1, kind: input, shape index: {}]
  %s2 = inlined_call_operand.vmem [shape: f32[1,128], index: 2, kind: input, shape index: {}]
  %s3 = inlined_call_operand.vmem [shape: bf16[512,128], index: 3, kind: output, shape index: {}]
  %s4 = sld [smem:[#allocation0]]
  $region53: #{conv_block_forward.1} parent=0
    _
  %s6 = ssub.s32 1, %s4
  %s7 = scalar_select 0, %s6, %s4
  loop: start=0, step=1, limit=14
  $region2: #{conv_block_forward.1} parent=0 // loop_pre_header
    _
  $region3: #{conv_block_forward.1} parent=0 // loop_header
    %s9 = sphi 0, %s13
    %p10 = scmp.ge.s32.totalorder %s9, 14
    %s16 = sphi 0, %s42
    %s17 = sphi 0, %s38
    %s18 = sphi 0, %s34
    %s19 = sphi 0, %s30
    %s20 = sphi 0, %s16
    %s21 = sphi 0, %s17
    %s22 = sphi 0, %s18
    %s23 = sphi 0, %s19
    %s24 = sphi 0, %s20
    %s25 = sphi 0, %s21
    %s26 = sphi 0, %s22
    %s27 = sphi 0, %s23
    %s51 = sphi 0, %s53
    %s54 = sphi 0, %s51
    %s55 = sphi 0, %s54
    %s71 = sphi 0, %s55
    %s79 = sphi 0, %s81
    %s82 = sphi 0, %s79
    %s83 = sphi 0, %s82
    %s99 = sphi 0, %s83
    %s105 = sphi 0, %s107
    %s108 = sphi 0, %s105
    %s109 = sphi 0, %s108
    %s125 = sphi 0, %s109
    %s137 = sphi 0, %s139
    %s140 = sphi 0, %s137
    %s141 = sphi 0, %s140
    %s157 = sphi 0, %s141
  $region4: #{conv_block_forward.1} parent=0 // loop_header_branch
    %12 = sbr.rel (%p10) target = $region8
  $region5: #{conv_block_forward.1} parent=0 // loop_body
    %s14 = ssub.s32 %s9, 1
    %s15 = ssub.s32 %s9, 2
    %s28 = sadd.s32 1, %s19
    %p29 = scmp.ge.s32.totalorder %s28, 3
    %s30 = scalar_select %p29, 0, %s28
    %s31 = sadd.s32 1, %s18
    %s32 = scalar_select %p29, %s31, %s18
    %p33 = scmp.ge.s32.totalorder %s32, 1
    %s34 = scalar_select %p33, 0, %s32
    %s35 = sadd.s32 1, %s17
    %s36 = scalar_select %p33, %s35, %s17
    %p37 = scmp.ge.s32.totalorder %s36, 2
    %s38 = scalar_select %p37, 0, %s36
    %s39 = sadd.s32 1, %s16
    %s40 = scalar_select %p37, %s39, %s16
    %p41 = scmp.ge.s32.totalorder %s40, 2
    %s42 = scalar_select %p41, 0, %s40
    %s43 = smul.u32 %s16, 3
    %s44 = sadd.s32 %s43, %s19
    %s45 = smul.u32 %s42, 3
    %s46 = sadd.s32 %s45, %s30
    %s47 = ssub.s32 %s44, %s46
    %s48 = ssub.s32 %s17, %s38
    %s49 = sor.u32 %s47, %s48
    %p50 = scmp.eq.s32.totalorder %s49, 0
    %s52 = sadd.s32 %s51, 1
    %s53 = scalar_select %p50, %s51, %s52
    %p56 = pneg %p50
    %p57 = scmp.eq.s32.totalorder %s9, 11
    %p58 = por %p56, %p57
    %p59 = scmp.ne.s32.totalorder %s51, %s54
    %p60 = scmp.eq.s32.totalorder %s9, 0
    %p61 = por %p59, %p60
    %p62 = scmp.ne.s32.totalorder %s51, %s54
    %p63 = scmp.eq.s32.totalorder %s14, 11
    %p64 = por %p62, %p63
    %p65 = scmp.ne.s32.totalorder %s54, %s55
    %p66 = scmp.eq.s32.totalorder %s14, 0
    %p67 = por %p65, %p66
    %p68 = scmp.ne.s32.totalorder %s54, %s55
    %p69 = scmp.eq.s32.totalorder %s15, 11
    %p70 = por %p68, %p69
    %p72 = scmp.ne.s32.totalorder %s55, %s71
    %p73 = scmp.eq.s32.totalorder %s15, 0
    %p74 = por %p72, %p73
    %s75 = ssub.s32 %s19, %s30
    %s76 = ssub.s32 %s18, %s34
    %s77 = sor.u32 %s75, %s76
    %p78 = scmp.eq.s32.totalorder %s77, 0
    %s80 = sadd.s32 %s79, 1
    %s81 = scalar_select %p78, %s79, %s80
    %p84 = pneg %p78
    %p85 = scmp.eq.s32.totalorder %s9, 11
    %p86 = por %p84, %p85
    %p87 = scmp.ne.s32.totalorder %s79, %s82
    %p88 = scmp.eq.s32.totalorder %s9, 0
    %p89 = por %p87, %p88
    %p90 = scmp.ne.s32.totalorder %s79, %s82
    %p91 = scmp.eq.s32.totalorder %s14, 11
    %p92 = por %p90, %p91
    %p93 = scmp.ne.s32.totalorder %s82, %s83
    %p94 = scmp.eq.s32.totalorder %s14, 0
    %p95 = por %p93, %p94
    %p96 = scmp.ne.s32.totalorder %s82, %s83
    %p97 = scmp.eq.s32.totalorder %s15, 11
    %p98 = por %p96, %p97
    %p100 = scmp.ne.s32.totalorder %s83, %s99
    %p101 = scmp.eq.s32.totalorder %s15, 0
    %p102 = por %p100, %p101
    %s103 = ssub.s32 %s18, %s34
    %p104 = scmp.eq.s32.totalorder %s103, 0
    %s106 = sadd.s32 %s105, 1
    %s107 = scalar_select %p104, %s105, %s106
    %p110 = pneg %p104
    %p111 = scmp.eq.s32.totalorder %s9, 11
    %p112 = por %p110, %p111
    %p113 = scmp.ne.s32.totalorder %s105, %s108
    %p114 = scmp.eq.s32.totalorder %s9, 0
    %p115 = por %p113, %p114
    %p116 = scmp.ne.s32.totalorder %s105, %s108
    %p117 = scmp.eq.s32.totalorder %s14, 11
    %p118 = por %p116, %p117
    %p119 = scmp.ne.s32.totalorder %s108, %s109
    %p120 = scmp.eq.s32.totalorder %s14, 0
    %p121 = por %p119, %p120
    %p122 = scmp.ne.s32.totalorder %s108, %s109
    %p123 = scmp.eq.s32.totalorder %s15, 11
    %p124 = por %p122, %p123
    %p126 = scmp.ne.s32.totalorder %s109, %s125
    %p127 = scmp.eq.s32.totalorder %s15, 0
    %p128 = por %p126, %p127
    %s129 = smul.u32 %s16, 2
    %s130 = sadd.s32 %s129, %s17
    %s131 = smul.u32 %s42, 2
    %s132 = sadd.s32 %s131, %s38
    %s133 = ssub.s32 %s130, %s132
    %s134 = ssub.s32 %s18, %s34
    %s135 = sor.u32 %s133, %s134
    %p136 = scmp.eq.s32.totalorder %s135, 0
    %s138 = sadd.s32 %s137, 1
    %s139 = scalar_select %p136, %s137, %s138
    %p142 = pneg %p136
    %p143 = scmp.eq.s32.totalorder %s9, 11
    %p144 = por %p142, %p143
    %p145 = scmp.ne.s32.totalorder %s137, %s140
    %p146 = scmp.eq.s32.totalorder %s9, 0
    %p147 = por %p145, %p146
    %p148 = scmp.ne.s32.totalorder %s137, %s140
    %p149 = scmp.eq.s32.totalorder %s14, 11
    %p150 = por %p148, %p149
    %p151 = scmp.ne.s32.totalorder %s140, %s141
    %p152 = scmp.eq.s32.totalorder %s14, 0
    %p153 = por %p151, %p152
    %p154 = scmp.ne.s32.totalorder %s140, %s141
    %p155 = scmp.eq.s32.totalorder %s15, 11
    %p156 = por %p154, %p155
    %p158 = scmp.ne.s32.totalorder %s141, %s157
    %p159 = scmp.eq.s32.totalorder %s15, 0
    %p160 = por %p158, %p159
    %p161 = scmp.le.s32.totalorder 1, %s9
    %p162 = scmp.lt.s32.totalorder %s9, 13
    %p163 = pnand %p161, %p162
    %p164 = pneg %p163
    // Predicated region
    $region9: #{conv_block_forward.1} parent=5 // pred_check
      _
    $region10: #{conv_block_forward.1} parent=5 // pred_check_branch
      %166 = sbr.rel (%p163) target = $region12
    $region11: #{conv_block_forward.1} parent=5 // pred_region
      %s167 = ssub.s32 %s9, 1
      // Predicated region
      $region13: #{conv_block_forward.1} parent=11 // pred_check
        %p168 = pneg %p121
      $region14: #{conv_block_forward.1} parent=11 // pred_check_branch
        %170 = sbr.rel (%p168) target = $region16
      $region15: #{conv_block_forward.1} parent=11 // pred_region
        %p171 = scmp.lt.s32.totalorder %s22, 0
        %s172 = scalar_select %p171, %s22, 0
        %s173 = scalar_lea.vmem %s2, %s172
      $region16: #{conv_block_forward.1} parent=11 // pred_fallthru
        _
    $region12: #{conv_block_forward.1} parent=5 // pred_fallthru
      _
    %p174 = scmp.lt.s32.totalorder %s9, 12
    // Predicated region
    $region17: #{conv_block_forward.1} parent=5 // pred_check
      %p175 = pneg %p174
    $region18: #{conv_block_forward.1} parent=5 // pred_check_branch
      %177 = sbr.rel (%p175) target = $region20
    $region19: #{conv_block_forward.1} parent=5 // pred_region
      // Predicated region
      $region21: #{conv_block_forward.1} parent=19 // pred_check
        %p178 = pneg %p61
      $region22: #{conv_block_forward.1} parent=19 // pred_check_branch
        %180 = sbr.rel (%p178) target = $region24
      $region23: #{conv_block_forward.1} parent=19 // pred_region
        %s181 = smul.u32 %s16, 3
        %s182 = sadd.s32 %s181, %s19
        %s183 = smul.u32 8, %s17
        %p184 = scmp.lt.s32.totalorder %s182, 5
        %s185 = scalar_select %p184, %s182, 5
        %p186 = scmp.lt.s32.totalorder %s183, 15
        %s187 = scalar_select %p186, %s183, 15
        %s188 = smul.addr %s187, 3
        %s189 = smul.addr %s185, 48
        %s190 = sadd.s32 %s188, %s189
        %s191 = smul.addr %s190, 4
        %s192 = scalar_lea.vmem %s0, %s191
        %s193 = smul.u32 %s16, 3
        %s194 = sadd.s32 %s193, %s19
        %s195 = smul.u32 8, %s17
      $region24: #{conv_block_forward.1} parent=19 // pred_fallthru
        _
      // Predicated region
      $region25: #{conv_block_forward.1} parent=19 // pred_check
        %p196 = pneg %p89
      $region26: #{conv_block_forward.1} parent=19 // pred_check_branch
        %198 = sbr.rel (%p196) target = $region28
      $region27: #{conv_block_forward.1} parent=19 // pred_region
        %p199 = scmp.lt.s32.totalorder %s19, 2
        %s200 = scalar_select %p199, %s19, 2
        %p201 = scmp.lt.s32.totalorder %s18, 0
        %s202 = scalar_select %p201, %s18, 0
        %s203 = smul.addr %s200, 3
        %s204 = sadd.s32 %s202, %s203
        %s205 = smul.addr %s204, 2
        %s206 = scalar_lea.vmem %s1, %s205
      $region28: #{conv_block_forward.1} parent=19 // pred_fallthru
        _
    $region20: #{conv_block_forward.1} parent=5 // pred_fallthru
      _
    %p207 = scmp.le.s32.totalorder 1, %s9
    %p208 = scmp.lt.s32.totalorder %s9, 13
    %p209 = pnand %p207, %p208
    %p210 = pneg %p209
    // Predicated region
    $region29: #{conv_block_forward.1} parent=5 // pred_check
      _
    $region30: #{conv_block_forward.1} parent=5 // pred_check_branch
      %212 = sbr.rel (%p209) target = $region32
    $region31: #{conv_block_forward.1} parent=5 // pred_region
      %s213 = ssub.s32 %s9, 1
      %s214 = smul.u32 %s20, 3
      %s215 = sadd.s32 %s214, %s23
      %s216 = smul.u32 8, %s21
      %p217 = scmp.lt.s32.totalorder %s215, 5
      %s218 = scalar_select %p217, %s215, 5
      %p219 = scmp.lt.s32.totalorder %s216, 15
      %s220 = scalar_select %p219, %s216, 15
      %s221 = smul.addr %s220, 3
      %s222 = smul.addr %s218, 48
      %s223 = sadd.s32 %s221, %s222
      %s224 = smul.addr %s223, 4
      %s225 = scalar_lea.vmem %s0, %s224
      %p226 = pneg %p67
      %p227 = pneg %p64
      %p228 = scmp.lt.s32.totalorder %s23, 2
      %s229 = scalar_select %p228, %s23, 2
      %p230 = scmp.lt.s32.totalorder %s22, 0
      %s231 = scalar_select %p230, %s22, 0
      %s232 = smul.addr %s229, 3
      %s233 = sadd.s32 %s231, %s232
      %s234 = smul.addr %s233, 2
      %s235 = scalar_lea.vmem %s1, %s234
      %p236 = pneg %p95
      %p237 = pneg %p92
      %p238 = scmp.lt.s32.totalorder %s22, 0
      %s239 = scalar_select %p238, %s22, 0
      %s240 = scalar_lea.vmem %s2, %s239
      %p241 = pneg %p121
      %p242 = pneg %p118
      %p243 = pneg %p153
      %p244 = pneg %p150
      %s245 = smul.u32 %s20, 2
      %s246 = sadd.s32 %s245, %s21
      %s247 = smul.u32 16, %s246
      %p248 = scmp.lt.s32.totalorder %s247, 63
      %s249 = scalar_select %p248, %s247, 63
      %p250 = scmp.lt.s32.totalorder %s22, 0
      %s251 = scalar_select %p250, %s22, 0
      %s252 = sadd.s32 %s251, %s249
      %s253 = smul.addr %s252, 4
      %s254 = scalar_lea.vmem %s3, %s253
      %s255 = smul.u32 %s20, 3
      %s256 = sadd.s32 %s255, %s23
      %s257 = smul.u32 8, %s21
      %p258 = scmp.lt.s32.totalorder %s256, 5
      %s259 = scalar_select %p258, %s256, 5
      %p260 = scmp.lt.s32.totalorder %s257, 15
      %s261 = scalar_select %p260, %s257, 15
      %s262 = smul.addr %s261, 3
      %s263 = smul.addr %s259, 48
      %s264 = sadd.s32 %s262, %s263
      %s265 = smul.addr %s264, 4
      %s266 = scalar_lea.vmem %s0, %s265
      %s267 = smul.u32 %s20, 3
      %s268 = sadd.s32 %s267, %s23
      %s269 = smul.u32 8, %s21
      %p270 = scmp.lt.s32.totalorder %s23, 2
      %s271 = scalar_select %p270, %s23, 2
      %p272 = scmp.lt.s32.totalorder %s22, 0
      %s273 = scalar_select %p272, %s22, 0
      %s274 = smul.addr %s271, 3
      %s275 = sadd.s32 %s273, %s274
      %s276 = smul.addr %s275, 2
      %s277 = scalar_lea.vmem %s1, %s276
      %p278 = scmp.lt.s32.totalorder %s22, 0
      %s279 = scalar_select %p278, %s22, 0
      %s280 = scalar_lea.vmem %s2, %s279
      %s281 = smul.u32 %s20, 2
      %s282 = sadd.s32 %s281, %s21
      %s283 = smul.u32 16, %s282
      %p284 = scmp.lt.s32.totalorder %s283, 63
      %s285 = scalar_select %p284, %s283, 63
      %p286 = scmp.lt.s32.totalorder %s22, 0
      %s287 = scalar_select %p286, %s22, 0
      %s288 = sadd.s32 %s287, %s285
      %s289 = smul.addr %s288, 4
      %s290 = scalar_lea.vmem %s3, %s289
      %s291 = smul.u32 %s20, 2
      %s292 = sadd.s32 %s291, %s21
      %s293 = smul.u32 16, %s292
      %p295 = scmp.eq.s32.totalorder %s23, 0
      // Predicated region
      $region33: #{conv_block_forward.1} parent=31 // pred_check
        %p296 = pneg %p295
      $region34: #{conv_block_forward.1} parent=31 // pred_check_branch
        %298 = sbr.rel (%p296) target = $region36
      $region35: #{conv_block_forward.1} parent=31 // pred_region
        %299 = vst [vmem:[#allocation2] sm:$0xff] 0.0
        %300 = vst [vmem:[#allocation2 + $0x8] sm:$0xff] 0.0
        %301 = vst [vmem:[#allocation2 + $0x10] sm:$0xff] 0.0
        %302 = vst [vmem:[#allocation2 + $0x18] sm:$0xff] 0.0
        %303 = vst [vmem:[#allocation2 + $0x20] sm:$0xff] 0.0
        %304 = vst [vmem:[#allocation2 + $0x28] sm:$0xff] 0.0
        %305 = vst [vmem:[#allocation2 + $0x30] sm:$0xff] 0.0
        %306 = vst [vmem:[#allocation2 + $0x38] sm:$0xff] 0.0
        %307 = vst [vmem:[#allocation2 + $0x40] sm:$0xff] 0.0
        %308 = vst [vmem:[#allocation2 + $0x48] sm:$0xff] 0.0
        %309 = vst [vmem:[#allocation2 + $0x50] sm:$0xff] 0.0
        %310 = vst [vmem:[#allocation2 + $0x58] sm:$0xff] 0.0
        %311 = vst [vmem:[#allocation2 + $0x60] sm:$0xff] 0.0
        %312 = vst [vmem:[#allocation2 + $0x68] sm:$0xff] 0.0
        %313 = vst [vmem:[#allocation2 + $0x70] sm:$0xff] 0.0
        %314 = vst [vmem:[#allocation2 + $0x78] sm:$0xff] 0.0
      $region36: #{conv_block_forward.1} parent=31 // pred_fallthru
        _
      %v315 = vld [vmem:[%s266] sm:$0xf]
      %v316 = vld [vmem:[%s266 + $0x4] sm:$0xf]
      %v317 = vld [vmem:[%s266 + $0x8] sm:$0x1]
      %v318 = vld [vmem:[%s266 + $0xc] sm:$0xf]
      %v319 = vld [vmem:[%s266 + $0x10] sm:$0xf]
      %v320 = vld [vmem:[%s266 + $0x14] sm:$0x1]
      %v321 = vld [vmem:[%s266 + $0x18] sm:$0xf]
      %v322 = vld [vmem:[%s266 + $0x1c] sm:$0xf]
      %v323 = vld [vmem:[%s266 + $0x20] sm:$0x1]
      %v324 = vld [vmem:[%s266 + $0x24] sm:$0xf]
      %v325 = vld [vmem:[%s266 + $0x28] sm:$0xf]
      %v326 = vld [vmem:[%s266 + $0x2c] sm:$0x1]
      %v327 = vld [vmem:[%s266 + $0x30] sm:$0xf]
      %v328 = vld [vmem:[%s266 + $0x34] sm:$0xf]
      %v329 = vld [vmem:[%s266 + $0x38] sm:$0x1]
      %v330 = vld [vmem:[%s266 + $0x3c] sm:$0xf]
      %v331 = vld [vmem:[%s266 + $0x40] sm:$0xf]
      %v332 = vld [vmem:[%s266 + $0x44] sm:$0x1]
      %v333 = vld [vmem:[%s266 + $0x48] sm:$0xf]
      %v334 = vld [vmem:[%s266 + $0x4c] sm:$0xf]
      %v335 = vld [vmem:[%s266 + $0x50] sm:$0x1]
      %v336 = vld [vmem:[%s266 + $0x54] sm:$0xf]
      %v337 = vld [vmem:[%s266 + $0x58] sm:$0xf]
      %v338 = vld [vmem:[%s266 + $0x5c] sm:$0x1]
      %v339 = vld [vmem:[%s277] sm:$0x3]
      %v340 = vld [vmem:[%s277 + $0x2] sm:$0x3]
      %v341 = vld [vmem:[%s277 + $0x4] sm:$0x3]
      %v342 = vld [vmem:[#allocation2] sm:$0xff]
      %v343 = vld [vmem:[#allocation2 + $0x8] sm:$0xff]
      %v344 = vld [vmem:[#allocation2 + $0x10] sm:$0xff]
      %v345 = vld [vmem:[#allocation2 + $0x18] sm:$0xff]
      %v346 = vld [vmem:[#allocation2 + $0x20] sm:$0xff]
      %v347 = vld [vmem:[#allocation2 + $0x28] sm:$0xff]
      %v348 = vld [vmem:[#allocation2 + $0x30] sm:$0xff]
      %v349 = vld [vmem:[#allocation2 + $0x38] sm:$0xff]
      %v350 = vld [vmem:[#allocation2 + $0x40] sm:$0xff]
      %v351 = vld [vmem:[#allocation2 + $0x48] sm:$0xff]
      %v352 = vld [vmem:[#allocation2 + $0x50] sm:$0xff]
      %v353 = vld [vmem:[#allocation2 + $0x58] sm:$0xff]
      %v354 = vld [vmem:[#allocation2 + $0x60] sm:$0xff]
      %v355 = vld [vmem:[#allocation2 + $0x68] sm:$0xff]
      %v356 = vld [vmem:[#allocation2 + $0x70] sm:$0xff]
      %v357 = vld [vmem:[#allocation2 + $0x78] sm:$0xff]
      %v374 = vunpack.c.l.b16 %v315
      %v375 = vunpack.c.l.b16 %v316
      %v376 = vunpack.c.l.b16 %v318
      %v377 = vunpack.c.l.b16 %v319
      %v378 = vunpack.c.l.b16 %v321
      %v379 = vunpack.c.l.b16 %v322
      %v380 = vunpack.c.l.b16 %v324
      %v381 = vunpack.c.l.b16 %v325
      %v382 = vunpack.c.l.b16 %v327
      %v383 = vunpack.c.l.b16 %v328
      %v384 = vunpack.c.l.b16 %v330
      %v385 = vunpack.c.l.b16 %v331
      %v386 = vunpack.c.l.b16 %v333
      %v387 = vunpack.c.l.b16 %v334
      %v388 = vunpack.c.l.b16 %v336
      %v389 = vunpack.c.l.b16 %v337
      %v390 = vpack.c.b16 %v375, %v374
      %v391 = vpack.c.b16 %v377, %v376
      %v392 = vpack.c.b16 %v379, %v378
      %v393 = vpack.c.b16 %v381, %v380
      %v394 = vpack.c.b16 %v383, %v382
      %v395 = vpack.c.b16 %v385, %v384
      %v396 = vpack.c.b16 %v387, %v386
      %v397 = vpack.c.b16 %v389, %v388
      %vm398 = vcmask 31744
      %v400 = vsel %vm398, %v390, 0
      %v403 = vsel %vm398, %v391, 0
      %v406 = vsel %vm398, %v392, 0
      %v409 = vsel %vm398, %v393, 0
      %v412 = vsel %vm398, %v394, 0
      %v415 = vsel %vm398, %v395, 0
      %v418 = vsel %vm398, %v396, 0
      %v421 = vsel %vm398, %v397, 0
      %vm423 = vcmask 1041408
      %v425 = vsel %vm423, %v339, 0
      %427 = vmatprep.subr.bf16.mxu0 0
      %428 = vmatpush1.bf16.msra.mxu0 0
      %429 = vmatprep.subr.bf16.mxu0 0
      %430 = vmatpush1.bf16.msra.mxu0 0
      %431 = vmatprep.subr.bf16.mxu0 0
      %432 = vmatpush1.bf16.msra.mxu0 0
      %433 = vmatprep.subr.bf16.mxu0 0
      %434 = vmatpush1.bf16.msra.mxu0 0
      %435 = vmatprep.subr.bf16.mxu0 0
      %436 = vmatpush1.bf16.msra.mxu0 0
      %437 = vmatprep.subr.bf16.mxu0 0
      %438 = vmatpush1.bf16.msra.mxu0 0
      %439 = vmatprep.subr.bf16.mxu0 0
      %440 = vmatpush1.bf16.msra.mxu0 0
      %441 = vmatprep.subr.bf16.mxu0 0
      %442 = vmatpush1.bf16.msra.mxu0 %v425
      %443 = vmatprep.subr.bf16.mxu0 0
      %444 = vmatpush2.bf16.msra.mxu0 0
      %445 = vmatprep.subr.bf16.mxu0 0
      %446 = vmatpush2.bf16.msra.mxu0 0
      %447 = vmatprep.subr.bf16.mxu0 0
      %448 = vmatpush2.bf16.msra.mxu0 0
      %449 = vmatprep.subr.bf16.mxu0 0
      %450 = vmatpush2.bf16.msra.mxu0 0
      %451 = vmatprep.subr.bf16.mxu0 0
      %452 = vmatpush2.bf16.msra.mxu0 0
      %453 = vmatprep.subr.bf16.mxu0 0
      %454 = vmatpush2.bf16.msra.mxu0 0
      %455 = vmatprep.subr.bf16.mxu0 0
      %456 = vmatpush2.bf16.msra.mxu0 0
      %457 = vmatprep.subr.bf16.mxu0 0
      %458 = vmatpush2.bf16.msra.mxu0 0
      %459 = vmatprep.mubr.bf16.mxu0 0
      %460 = vmatmul.mubr.bf16.gmra.mxu0 %v400
      %v461 = vpop.f32.mrf.mxu0
      %v462 = vadd.f32 0.0, %v461
      %v463 = vpop.f32.mrf.mxu0
      %v464 = vpop.f32.mrf.mxu0
      %v465 = vadd.f32 0.0, %v464
      %v466 = vpop.f32.mrf.mxu0
      %467 = vmatprep.mubr.bf16.mxu0 0
      %468 = vmatmul.mubr.bf16.gmra.mxu0 %v403
      %v469 = vpop.f32.mrf.mxu0
      %v470 = vadd.f32 0.0, %v469
      %v471 = vpop.f32.mrf.mxu0
      %v472 = vpop.f32.mrf.mxu0
      %v473 = vadd.f32 0.0, %v472
      %v474 = vpop.f32.mrf.mxu0
      %475 = vmatprep.mubr.bf16.mxu0 0
      %476 = vmatmul.mubr.bf16.gmra.mxu0 %v406
      %v477 = vpop.f32.mrf.mxu0
      %v478 = vadd.f32 0.0, %v477
      %v479 = vpop.f32.mrf.mxu0
      %v480 = vpop.f32.mrf.mxu0
      %v481 = vadd.f32 0.0, %v480
      %v482 = vpop.f32.mrf.mxu0
      %483 = vmatprep.mubr.bf16.mxu0 0
      %484 = vmatmul.mubr.bf16.gmra.mxu0 %v409
      %v485 = vpop.f32.mrf.mxu0
      %v486 = vadd.f32 0.0, %v485
      %v487 = vpop.f32.mrf.mxu0
      %v488 = vpop.f32.mrf.mxu0
      %v489 = vadd.f32 0.0, %v488
      %v490 = vpop.f32.mrf.mxu0
      %491 = vmatprep.mubr.bf16.mxu0 0
      %492 = vmatmul.mubr.bf16.gmra.mxu0 %v412
      %v493 = vpop.f32.mrf.mxu0
      %v494 = vadd.f32 0.0, %v493
      %v495 = vpop.f32.mrf.mxu0
      %v496 = vpop.f32.mrf.mxu0
      %v497 = vadd.f32 0.0, %v496
      %v498 = vpop.f32.mrf.mxu0
      %499 = vmatprep.mubr.bf16.mxu0 0
      %500 = vmatmul.mubr.bf16.gmra.mxu0 %v415
      %v501 = vpop.f32.mrf.mxu0
      %v502 = vadd.f32 0.0, %v501
      %v503 = vpop.f32.mrf.mxu0
      %v504 = vpop.f32.mrf.mxu0
      %v505 = vadd.f32 0.0, %v504
      %v506 = vpop.f32.mrf.mxu0
      %507 = vmatprep.mubr.bf16.mxu0 0
      %508 = vmatmul.mubr.bf16.gmra.mxu0 %v418
      %v509 = vpop.f32.mrf.mxu0
      %v510 = vadd.f32 0.0, %v509
      %v511 = vpop.f32.mrf.mxu0
      %v512 = vpop.f32.mrf.mxu0
      %v513 = vadd.f32 0.0, %v512
      %v514 = vpop.f32.mrf.mxu0
      %515 = vmatprep.mubr.bf16.mxu0 0
      %516 = vmatmul.mubr.bf16.gmra.mxu0 %v421
      %v517 = vpop.f32.mrf.mxu0
      %v518 = vadd.f32 0.0, %v517
      %v519 = vpop.f32.mrf.mxu0
      %v520 = vpop.f32.mrf.mxu0
      %v521 = vadd.f32 0.0, %v520
      %v522 = vpop.f32.mrf.mxu0
      %523 = vdwg.mxu0
      %v524 = vadd.f32 %v342, %v462
      %v525 = vadd.f32 %v343, %v465
      %v526 = vadd.f32 %v344, %v470
      %v527 = vadd.f32 %v345, %v473
      %v528 = vadd.f32 %v346, %v478
      %v529 = vadd.f32 %v347, %v481
      %v530 = vadd.f32 %v348, %v486
      %v531 = vadd.f32 %v349, %v489
      %v532 = vadd.f32 %v350, %v494
      %v533 = vadd.f32 %v351, %v497
      %v534 = vadd.f32 %v352, %v502
      %v535 = vadd.f32 %v353, %v505
      %v536 = vadd.f32 %v354, %v510
      %v537 = vadd.f32 %v355, %v513
      %v538 = vadd.f32 %v356, %v518
      %v539 = vadd.f32 %v357, %v521
      %vm540 = vsmask.f32 3328
      %vm541 = vsmask.f32 7440
      %vm542 = vmor %vm540, %vm541
      %v544 = vshrl.u32 %v315, 16
      %v546 = vrot.slane %v544, 4
      %v547 = vshll.u32 %v315, 16
      %v549 = vrot.slane %v547, 5
      %v550 = vor.u32 %v546, %v549
      %v551 = vrot.slane %v550, 4
      %v553 = vshll.u32 %v316, 16
      %v555 = vrot.slane %v553, 5
      %v556 = vsel %vm542, %v551, %v555
      %v557 = vshrl.u32 %v316, 16
      %v559 = vrot.slane %v557, 4
      %v560 = vor.u32 %v559, %v555
      %v561 = vrot.slane %v560, 4
      %v563 = vshll.u32 %v317, 16
      %v565 = vrot.slane %v563, 5
      %v566 = vsel %vm542, %v561, %v565
      %v568 = vshrl.u32 %v318, 16
      %v570 = vrot.slane %v568, 4
      %v571 = vshll.u32 %v318, 16
      %v573 = vrot.slane %v571, 5
      %v574 = vor.u32 %v570, %v573
      %v575 = vrot.slane %v574, 4
      %v577 = vshll.u32 %v319, 16
      %v579 = vrot.slane %v577, 5
      %v580 = vsel %vm542, %v575, %v579
      %v581 = vshrl.u32 %v319, 16
      %v583 = vrot.slane %v581, 4
      %v584 = vor.u32 %v583, %v579
      %v585 = vrot.slane %v584, 4
      %v587 = vshll.u32 %v320, 16
      %v589 = vrot.slane %v587, 5
      %v590 = vsel %vm542, %v585, %v589
      %v592 = vshrl.u32 %v321, 16
      %v594 = vrot.slane %v592, 4
      %v595 = vshll.u32 %v321, 16
      %v597 = vrot.slane %v595, 5
      %v598 = vor.u32 %v594, %v597
      %v599 = vrot.slane %v598, 4
      %v601 = vshll.u32 %v322, 16
      %v603 = vrot.slane %v601, 5
      %v604 = vsel %vm542, %v599, %v603
      %v605 = vshrl.u32 %v322, 16
      %v607 = vrot.slane %v605, 4
      %v608 = vor.u32 %v607, %v603
      %v609 = vrot.slane %v608, 4
      %v611 = vshll.u32 %v323, 16
      %v613 = vrot.slane %v611, 5
      %v614 = vsel %vm542, %v609, %v613
      %v616 = vshrl.u32 %v324, 16
      %v618 = vrot.slane %v616, 4
      %v619 = vshll.u32 %v324, 16
      %v621 = vrot.slane %v619, 5
      %v622 = vor.u32 %v618, %v621
      %v623 = vrot.slane %v622, 4
      %v625 = vshll.u32 %v325, 16
      %v627 = vrot.slane %v625, 5
      %v628 = vsel %vm542, %v623, %v627
      %v629 = vshrl.u32 %v325, 16
      %v631 = vrot.slane %v629, 4
      %v632 = vor.u32 %v631, %v627
      %v633 = vrot.slane %v632, 4
      %v635 = vshll.u32 %v326, 16
      %v637 = vrot.slane %v635, 5
      %v638 = vsel %vm542, %v633, %v637
      %v640 = vshrl.u32 %v327, 16
      %v642 = vrot.slane %v640, 4
      %v643 = vshll.u32 %v327, 16
      %v645 = vrot.slane %v643, 5
      %v646 = vor.u32 %v642, %v645
      %v647 = vrot.slane %v646, 4
      %v649 = vshll.u32 %v328, 16
      %v651 = vrot.slane %v649, 5
      %v652 = vsel %vm542, %v647, %v651
      %v653 = vshrl.u32 %v328, 16
      %v655 = vrot.slane %v653, 4
      %v656 = vor.u32 %v655, %v651
      %v657 = vrot.slane %v656, 4
      %v659 = vshll.u32 %v329, 16
      %v661 = vrot.slane %v659, 5
      %v662 = vsel %vm542, %v657, %v661
      %v664 = vshrl.u32 %v330, 16
      %v666 = vrot.slane %v664, 4
      %v667 = vshll.u32 %v330, 16
      %v669 = vrot.slane %v667, 5
      %v670 = vor.u32 %v666, %v669
      %v671 = vrot.slane %v670, 4
      %v673 = vshll.u32 %v331, 16
      %v675 = vrot.slane %v673, 5
      %v676 = vsel %vm542, %v671, %v675
      %v677 = vshrl.u32 %v331, 16
      %v679 = vrot.slane %v677, 4
      %v680 = vor.u32 %v679, %v675
      %v681 = vrot.slane %v680, 4
      %v683 = vshll.u32 %v332, 16
      %v685 = vrot.slane %v683, 5
      %v686 = vsel %vm542, %v681, %v685
      %v688 = vshrl.u32 %v333, 16
      %v690 = vrot.slane %v688, 4
      %v691 = vshll.u32 %v333, 16
      %v693 = vrot.slane %v691, 5
      %v694 = vor.u32 %v690, %v693
      %v695 = vrot.slane %v694, 4
      %v697 = vshll.u32 %v334, 16
      %v699 = vrot.slane %v697, 5
      %v700 = vsel %vm542, %v695, %v699
      %v701 = vshrl.u32 %v334, 16
      %v703 = vrot.slane %v701, 4
      %v704 = vor.u32 %v703, %v699
      %v705 = vrot.slane %v704, 4
      %v707 = vshll.u32 %v335, 16
      %v709 = vrot.slane %v707, 5
      %v710 = vsel %vm542, %v705, %v709
      %v712 = vshrl.u32 %v336, 16
      %v714 = vrot.slane %v712, 4
      %v715 = vshll.u32 %v336, 16
      %v717 = vrot.slane %v715, 5
      %v718 = vor.u32 %v714, %v717
      %v719 = vrot.slane %v718, 4
      %v721 = vshll.u32 %v337, 16
      %v723 = vrot.slane %v721, 5
      %v724 = vsel %vm542, %v719, %v723
      %v725 = vshrl.u32 %v337, 16
      %v727 = vrot.slane %v725, 4
      %v728 = vor.u32 %v727, %v723
      %v729 = vrot.slane %v728, 4
      %v731 = vshll.u32 %v338, 16
      %v733 = vrot.slane %v731, 5
      %v734 = vsel %vm542, %v729, %v733
      %v735 = vunpack.c.l.b16 %v556
      %v736 = vunpack.c.l.b16 %v566
      %v737 = vunpack.c.l.b16 %v580
      %v738 = vunpack.c.l.b16 %v590
      %v739 = vunpack.c.l.b16 %v604
      %v740 = vunpack.c.l.b16 %v614
      %v741 = vunpack.c.l.b16 %v628
      %v742 = vunpack.c.l.b16 %v638
      %v743 = vunpack.c.l.b16 %v652
      %v744 = vunpack.c.l.b16 %v662
      %v745 = vunpack.c.l.b16 %v676
      %v746 = vunpack.c.l.b16 %v686
      %v747 = vunpack.c.l.b16 %v700
      %v748 = vunpack.c.l.b16 %v710
      %v749 = vunpack.c.l.b16 %v724
      %v750 = vunpack.c.l.b16 %v734
      %v751 = vpack.c.b16 %v736, %v735
      %v752 = vpack.c.b16 %v738, %v737
      %v753 = vpack.c.b16 %v740, %v739
      %v754 = vpack.c.b16 %v742, %v741
      %v755 = vpack.c.b16 %v744, %v743
      %v756 = vpack.c.b16 %v746, %v745
      %v757 = vpack.c.b16 %v748, %v747
      %v758 = vpack.c.b16 %v750, %v749
      %v760 = vsel %vm398, %v751, 0
      %v763 = vsel %vm398, %v752, 0
      %v766 = vsel %vm398, %v753, 0
      %v769 = vsel %vm398, %v754, 0
      %v772 = vsel %vm398, %v755, 0
      %v775 = vsel %vm398, %v756, 0
      %v778 = vsel %vm398, %v757, 0
      %v781 = vsel %vm398, %v758, 0
      %v784 = vsel %vm423, %v340, 0
      %786 = vmatprep.subr.bf16.mxu0 0
      %787 = vmatpush1.bf16.msra.mxu0 0
      %788 = vmatprep.subr.bf16.mxu0 0
      %789 = vmatpush1.bf16.msra.mxu0 0
      %790 = vmatprep.subr.bf16.mxu0 0
      %791 = vmatpush1.bf16.msra.mxu0 0
      %792 = vmatprep.subr.bf16.mxu0 0
      %793 = vmatpush1.bf16.msra.mxu0 0
      %794 = vmatprep.subr.bf16.mxu0 0
      %795 = vmatpush1.bf16.msra.mxu0 0
      %796 = vmatprep.subr.bf16.mxu0 0
      %797 = vmatpush1.bf16.msra.mxu0 0
      %798 = vmatprep.subr.bf16.mxu0 0
      %799 = vmatpush1.bf16.msra.mxu0 0
      %800 = vmatprep.subr.bf16.mxu0 0
      %801 = vmatpush1.bf16.msra.mxu0 %v784
      %802 = vmatprep.subr.bf16.mxu0 0
      %803 = vmatpush2.bf16.msra.mxu0 0
      %804 = vmatprep.subr.bf16.mxu0 0
      %805 = vmatpush2.bf16.msra.mxu0 0
      %806 = vmatprep.subr.bf16.mxu0 0
      %807 = vmatpush2.bf16.msra.mxu0 0
      %808 = vmatprep.subr.bf16.mxu0 0
      %809 = vmatpush2.bf16.msra.mxu0 0
      %810 = vmatprep.subr.bf16.mxu0 0
      %811 = vmatpush2.bf16.msra.mxu0 0
      %812 = vmatprep.subr.bf16.mxu0 0
      %813 = vmatpush2.bf16.msra.mxu0 0
      %814 = vmatprep.subr.bf16.mxu0 0
      %815 = vmatpush2.bf16.msra.mxu0 0
      %816 = vmatprep.subr.bf16.mxu0 0
      %817 = vmatpush2.bf16.msra.mxu0 0
      %818 = vmatprep.mubr.bf16.mxu0 0
      %819 = vmatmul.mubr.bf16.gmra.mxu0 %v760
      %v820 = vpop.f32.mrf.mxu0
      %v821 = vadd.f32 0.0, %v820
      %v822 = vpop.f32.mrf.mxu0
      %v823 = vpop.f32.mrf.mxu0
      %v824 = vadd.f32 0.0, %v823
      %v825 = vpop.f32.mrf.mxu0
      %826 = vmatprep.mubr.bf16.mxu0 0
      %827 = vmatmul.mubr.bf16.gmra.mxu0 %v763
      %v828 = vpop.f32.mrf.mxu0
      %v829 = vadd.f32 0.0, %v828
      %v830 = vpop.f32.mrf.mxu0
      %v831 = vpop.f32.mrf.mxu0
      %v832 = vadd.f32 0.0, %v831
      %v833 = vpop.f32.mrf.mxu0
      %834 = vmatprep.mubr.bf16.mxu0 0
      %835 = vmatmul.mubr.bf16.gmra.mxu0 %v766
      %v836 = vpop.f32.mrf.mxu0
      %v837 = vadd.f32 0.0, %v836
      %v838 = vpop.f32.mrf.mxu0
      %v839 = vpop.f32.mrf.mxu0
      %v840 = vadd.f32 0.0, %v839
      %v841 = vpop.f32.mrf.mxu0
      %842 = vmatprep.mubr.bf16.mxu0 0
      %843 = vmatmul.mubr.bf16.gmra.mxu0 %v769
      %v844 = vpop.f32.mrf.mxu0
      %v845 = vadd.f32 0.0, %v844
      %v846 = vpop.f32.mrf.mxu0
      %v847 = vpop.f32.mrf.mxu0
      %v848 = vadd.f32 0.0, %v847
      %v849 = vpop.f32.mrf.mxu0
      %850 = vmatprep.mubr.bf16.mxu0 0
      %851 = vmatmul.mubr.bf16.gmra.mxu0 %v772
      %v852 = vpop.f32.mrf.mxu0
      %v853 = vadd.f32 0.0, %v852
      %v854 = vpop.f32.mrf.mxu0
      %v855 = vpop.f32.mrf.mxu0
      %v856 = vadd.f32 0.0, %v855
      %v857 = vpop.f32.mrf.mxu0
      %858 = vmatprep.mubr.bf16.mxu0 0
      %859 = vmatmul.mubr.bf16.gmra.mxu0 %v775
      %v860 = vpop.f32.mrf.mxu0
      %v861 = vadd.f32 0.0, %v860
      %v862 = vpop.f32.mrf.mxu0
      %v863 = vpop.f32.mrf.mxu0
      %v864 = vadd.f32 0.0, %v863
      %v865 = vpop.f32.mrf.mxu0
      %866 = vmatprep.mubr.bf16.mxu0 0
      %867 = vmatmul.mubr.bf16.gmra.mxu0 %v778
      %v868 = vpop.f32.mrf.mxu0
      %v869 = vadd.f32 0.0, %v868
      %v870 = vpop.f32.mrf.mxu0
      %v871 = vpop.f32.mrf.mxu0
      %v872 = vadd.f32 0.0, %v871
      %v873 = vpop.f32.mrf.mxu0
      %874 = vmatprep.mubr.bf16.mxu0 0
      %875 = vmatmul.mubr.bf16.gmra.mxu0 %v781
      %v876 = vpop.f32.mrf.mxu0
      %v877 = vadd.f32 0.0, %v876
      %v878 = vpop.f32.mrf.mxu0
      %v879 = vpop.f32.mrf.mxu0
      %v880 = vadd.f32 0.0, %v879
      %v881 = vpop.f32.mrf.mxu0
      %882 = vdwg.mxu0
      %v883 = vadd.f32 %v524, %v821
      %v884 = vadd.f32 %v525, %v824
      %v885 = vadd.f32 %v526, %v829
      %v886 = vadd.f32 %v527, %v832
      %v887 = vadd.f32 %v528, %v837
      %v888 = vadd.f32 %v529, %v840
      %v889 = vadd.f32 %v530, %v845
      %v890 = vadd.f32 %v531, %v848
      %v891 = vadd.f32 %v532, %v853
      %v892 = vadd.f32 %v533, %v856
      %v893 = vadd.f32 %v534, %v861
      %v894 = vadd.f32 %v535, %v864
      %v895 = vadd.f32 %v536, %v869
      %v896 = vadd.f32 %v537, %v872
      %v897 = vadd.f32 %v538, %v877
      %v898 = vadd.f32 %v539, %v880
      %vm907 = vcmask 1042432
      %vm908 = vcmask 1046532
      %vm909 = vmor %vm907, %vm908
      %v910 = vrot.slane %v315, 5
      %v911 = vrot.slane %v910, 4
      %v912 = vrot.slane %v316, 5
      %v913 = vsel %vm909, %v911, %v912
      %v914 = vrot.slane %v912, 4
      %v915 = vrot.slane %v317, 5
      %v916 = vsel %vm909, %v914, %v915
      %v917 = vrot.slane %v318, 5
      %v918 = vrot.slane %v917, 4
      %v919 = vrot.slane %v319, 5
      %v920 = vsel %vm909, %v918, %v919
      %v921 = vrot.slane %v919, 4
      %v922 = vrot.slane %v320, 5
      %v923 = vsel %vm909, %v921, %v922
      %v924 = vrot.slane %v321, 5
      %v925 = vrot.slane %v924, 4
      %v926 = vrot.slane %v322, 5
      %v927 = vsel %vm909, %v925, %v926
      %v928 = vrot.slane %v926, 4
      %v929 = vrot.slane %v323, 5
      %v930 = vsel %vm909, %v928, %v929
      %v931 = vrot.slane %v324, 5
      %v932 = vrot.slane %v931, 4
      %v933 = vrot.slane %v325, 5
      %v934 = vsel %vm909, %v932, %v933
      %v935 = vrot.slane %v933, 4
      %v936 = vrot.slane %v326, 5
      %v937 = vsel %vm909, %v935, %v936
      %v938 = vrot.slane %v327, 5
      %v939 = vrot.slane %v938, 4
      %v940 = vrot.slane %v328, 5
      %v941 = vsel %vm909, %v939, %v940
      %v942 = vrot.slane %v940, 4
      %v943 = vrot.slane %v329, 5
      %v944 = vsel %vm909, %v942, %v943
      %v945 = vrot.slane %v330, 5
      %v946 = vrot.slane %v945, 4
      %v947 = vrot.slane %v331, 5
      %v948 = vsel %vm909, %v946, %v947
      %v949 = vrot.slane %v947, 4
      %v950 = vrot.slane %v332, 5
      %v951 = vsel %vm909, %v949, %v950
      %v952 = vrot.slane %v333, 5
      %v953 = vrot.slane %v952, 4
      %v954 = vrot.slane %v334, 5
      %v955 = vsel %vm909, %v953, %v954
      %v956 = vrot.slane %v954, 4
      %v957 = vrot.slane %v335, 5
      %v958 = vsel %vm909, %v956, %v957
      %v959 = vrot.slane %v336, 5
      %v960 = vrot.slane %v959, 4
      %v961 = vrot.slane %v337, 5
      %v962 = vsel %vm909, %v960, %v961
      %v963 = vrot.slane %v961, 4
      %v964 = vrot.slane %v338, 5
      %v965 = vsel %vm909, %v963, %v964
      %v966 = vunpack.c.l.b16 %v913
      %v967 = vunpack.c.l.b16 %v916
      %v968 = vunpack.c.l.b16 %v920
      %v969 = vunpack.c.l.b16 %v923
      %v970 = vunpack.c.l.b16 %v927
      %v971 = vunpack.c.l.b16 %v930
      %v972 = vunpack.c.l.b16 %v934
      %v973 = vunpack.c.l.b16 %v937
      %v974 = vunpack.c.l.b16 %v941
      %v975 = vunpack.c.l.b16 %v944
      %v976 = vunpack.c.l.b16 %v948
      %v977 = vunpack.c.l.b16 %v951
      %v978 = vunpack.c.l.b16 %v955
      %v979 = vunpack.c.l.b16 %v958
      %v980 = vunpack.c.l.b16 %v962
      %v981 = vunpack.c.l.b16 %v965
      %v982 = vpack.c.b16 %v967, %v966
      %v983 = vpack.c.b16 %v969, %v968
      %v984 = vpack.c.b16 %v971, %v970
      %v985 = vpack.c.b16 %v973, %v972
      %v986 = vpack.c.b16 %v975, %v974
      %v987 = vpack.c.b16 %v977, %v976
      %v988 = vpack.c.b16 %v979, %v978
      %v989 = vpack.c.b16 %v981, %v980
      %v991 = vsel %vm398, %v982, 0
      %v994 = vsel %vm398, %v983, 0
      %v997 = vsel %vm398, %v984, 0
      %v1000 = vsel %vm398, %v985, 0
      %v1003 = vsel %vm398, %v986, 0
      %v1006 = vsel %vm398, %v987, 0
      %v1009 = vsel %vm398, %v988, 0
      %v1012 = vsel %vm398, %v989, 0
      %v1015 = vsel %vm423, %v341, 0
      %1017 = vmatprep.subr.bf16.mxu0 0
      %1018 = vmatpush1.bf16.msra.mxu0 0
      %1019 = vmatprep.subr.bf16.mxu0 0
      %1020 = vmatpush1.bf16.msra.mxu0 0
      %1021 = vmatprep.subr.bf16.mxu0 0
      %1022 = vmatpush1.bf16.msra.mxu0 0
      %1023 = vmatprep.subr.bf16.mxu0 0
      %1024 = vmatpush1.bf16.msra.mxu0 0
      %1025 = vmatprep.subr.bf16.mxu0 0
      %1026 = vmatpush1.bf16.msra.mxu0 0
      %1027 = vmatprep.subr.bf16.mxu0 0
      %1028 = vmatpush1.bf16.msra.mxu0 0
      %1029 = vmatprep.subr.bf16.mxu0 0
      %1030 = vmatpush1.bf16.msra.mxu0 0
      %1031 = vmatprep.subr.bf16.mxu0 0
      %1032 = vmatpush1.bf16.msra.mxu0 %v1015
      %1033 = vmatprep.subr.bf16.mxu0 0
      %1034 = vmatpush2.bf16.msra.mxu0 0
      %1035 = vmatprep.subr.bf16.mxu0 0
      %1036 = vmatpush2.bf16.msra.mxu0 0
      %1037 = vmatprep.subr.bf16.mxu0 0
      %1038 = vmatpush2.bf16.msra.mxu0 0
      %1039 = vmatprep.subr.bf16.mxu0 0
      %1040 = vmatpush2.bf16.msra.mxu0 0
      %1041 = vmatprep.subr.bf16.mxu0 0
      %1042 = vmatpush2.bf16.msra.mxu0 0
      %1043 = vmatprep.subr.bf16.mxu0 0
      %1044 = vmatpush2.bf16.msra.mxu0 0
      %1045 = vmatprep.subr.bf16.mxu0 0
      %1046 = vmatpush2.bf16.msra.mxu0 0
      %1047 = vmatprep.subr.bf16.mxu0 0
      %1048 = vmatpush2.bf16.msra.mxu0 0
      %1049 = vmatprep.mubr.bf16.mxu0 0
      %1050 = vmatmul.mubr.bf16.gmra.mxu0 %v991
      %v1051 = vpop.f32.mrf.mxu0
      %v1052 = vadd.f32 0.0, %v1051
      %v1053 = vpop.f32.mrf.mxu0
      %v1054 = vpop.f32.mrf.mxu0
      %v1055 = vadd.f32 0.0, %v1054
      %v1056 = vpop.f32.mrf.mxu0
      %1057 = vmatprep.mubr.bf16.mxu0 0
      %1058 = vmatmul.mubr.bf16.gmra.mxu0 %v994
      %v1059 = vpop.f32.mrf.mxu0
      %v1060 = vadd.f32 0.0, %v1059
      %v1061 = vpop.f32.mrf.mxu0
      %v1062 = vpop.f32.mrf.mxu0
      %v1063 = vadd.f32 0.0, %v1062
      %v1064 = vpop.f32.mrf.mxu0
      %1065 = vmatprep.mubr.bf16.mxu0 0
      %1066 = vmatmul.mubr.bf16.gmra.mxu0 %v997
      %v1067 = vpop.f32.mrf.mxu0
      %v1068 = vadd.f32 0.0, %v1067
      %v1069 = vpop.f32.mrf.mxu0
      %v1070 = vpop.f32.mrf.mxu0
      %v1071 = vadd.f32 0.0, %v1070
      %v1072 = vpop.f32.mrf.mxu0
      %1073 = vmatprep.mubr.bf16.mxu0 0
      %1074 = vmatmul.mubr.bf16.gmra.mxu0 %v1000
      %v1075 = vpop.f32.mrf.mxu0
      %v1076 = vadd.f32 0.0, %v1075
      %v1077 = vpop.f32.mrf.mxu0
      %v1078 = vpop.f32.mrf.mxu0
      %v1079 = vadd.f32 0.0, %v1078
      %v1080 = vpop.f32.mrf.mxu0
      %1081 = vmatprep.mubr.bf16.mxu0 0
      %1082 = vmatmul.mubr.bf16.gmra.mxu0 %v1003
      %v1083 = vpop.f32.mrf.mxu0
      %v1084 = vadd.f32 0.0, %v1083
      %v1085 = vpop.f32.mrf.mxu0
      %v1086 = vpop.f32.mrf.mxu0
      %v1087 = vadd.f32 0.0, %v1086
      %v1088 = vpop.f32.mrf.mxu0
      %1089 = vmatprep.mubr.bf16.mxu0 0
      %1090 = vmatmul.mubr.bf16.gmra.mxu0 %v1006
      %v1091 = vpop.f32.mrf.mxu0
      %v1092 = vadd.f32 0.0, %v1091
      %v1093 = vpop.f32.mrf.mxu0
      %v1094 = vpop.f32.mrf.mxu0
      %v1095 = vadd.f32 0.0, %v1094
      %v1096 = vpop.f32.mrf.mxu0
      %1097 = vmatprep.mubr.bf16.mxu0 0
      %1098 = vmatmul.mubr.bf16.gmra.mxu0 %v1009
      %v1099 = vpop.f32.mrf.mxu0
      %v1100 = vadd.f32 0.0, %v1099
      %v1101 = vpop.f32.mrf.mxu0
      %v1102 = vpop.f32.mrf.mxu0
      %v1103 = vadd.f32 0.0, %v1102
      %v1104 = vpop.f32.mrf.mxu0
      %1105 = vmatprep.mubr.bf16.mxu0 0
      %1106 = vmatmul.mubr.bf16.gmra.mxu0 %v1012
      %v1107 = vpop.f32.mrf.mxu0
      %v1108 = vadd.f32 0.0, %v1107
      %v1109 = vpop.f32.mrf.mxu0
      %v1110 = vpop.f32.mrf.mxu0
      %v1111 = vadd.f32 0.0, %v1110
      %v1112 = vpop.f32.mrf.mxu0
      %1113 = vdwg.mxu0
      %v1114 = vadd.f32 %v883, %v1052
      %v1115 = vadd.f32 %v884, %v1055
      %v1116 = vadd.f32 %v885, %v1060
      %v1117 = vadd.f32 %v886, %v1063
      %v1118 = vadd.f32 %v887, %v1068
      %v1119 = vadd.f32 %v888, %v1071
      %v1120 = vadd.f32 %v889, %v1076
      %v1121 = vadd.f32 %v890, %v1079
      %v1122 = vadd.f32 %v891, %v1084
      %v1123 = vadd.f32 %v892, %v1087
      %v1124 = vadd.f32 %v893, %v1092
      %v1125 = vadd.f32 %v894, %v1095
      %v1126 = vadd.f32 %v895, %v1100
      %v1127 = vadd.f32 %v896, %v1103
      %v1128 = vadd.f32 %v897, %v1108
      %v1129 = vadd.f32 %v898, %v1111
      %1130 = vst [vmem:[#allocation2] sm:$0xff] %v1114
      %1131 = vst [vmem:[#allocation2 + $0x8] sm:$0xff] %v1115
      %1132 = vst [vmem:[#allocation2 + $0x10] sm:$0xff] %v1116
      %1133 = vst [vmem:[#allocation2 + $0x18] sm:$0xff] %v1117
      %1134 = vst [vmem:[#allocation2 + $0x20] sm:$0xff] %v1118
      %1135 = vst [vmem:[#allocation2 + $0x28] sm:$0xff] %v1119
      %1136 = vst [vmem:[#allocation2 + $0x30] sm:$0xff] %v1120
      %1137 = vst [vmem:[#allocation2 + $0x38] sm:$0xff] %v1121
      %1138 = vst [vmem:[#allocation2 + $0x40] sm:$0xff] %v1122
      %1139 = vst [vmem:[#allocation2 + $0x48] sm:$0xff] %v1123
      %1140 = vst [vmem:[#allocation2 + $0x50] sm:$0xff] %v1124
      %1141 = vst [vmem:[#allocation2 + $0x58] sm:$0xff] %v1125
      %1142 = vst [vmem:[#allocation2 + $0x60] sm:$0xff] %v1126
      %1143 = vst [vmem:[#allocation2 + $0x68] sm:$0xff] %v1127
      %1144 = vst [vmem:[#allocation2 + $0x70] sm:$0xff] %v1128
      %1145 = vst [vmem:[#allocation2 + $0x78] sm:$0xff] %v1129
      %p1146 = scmp.eq.s32.totalorder %s23, 2
      // Predicated region
      $region37: #{conv_block_forward.1} parent=31 // pred_check
        %p1147 = pneg %p1146
      $region38: #{conv_block_forward.1} parent=31 // pred_check_branch
        %1149 = sbr.rel (%p1147) target = $region40
      $region39: #{conv_block_forward.1} parent=31 // pred_region
        %v1150 = vld [vmem:[#allocation2] sm:$0xff]
        %v1151 = vld [vmem:[#allocation2 + $0x8] sm:$0xff]
        %v1152 = vld [vmem:[#allocation2 + $0x10] sm:$0xff]
        %v1153 = vld [vmem:[#allocation2 + $0x18] sm:$0xff]
        %v1154 = vld [vmem:[#allocation2 + $0x20] sm:$0xff]
        %v1155 = vld [vmem:[#allocation2 + $0x28] sm:$0xff]
        %v1156 = vld [vmem:[#allocation2 + $0x30] sm:$0xff]
        %v1157 = vld [vmem:[#allocation2 + $0x38] sm:$0xff]
        %v1158 = vld [vmem:[#allocation2 + $0x40] sm:$0xff]
        %v1159 = vld [vmem:[#allocation2 + $0x48] sm:$0xff]
        %v1160 = vld [vmem:[#allocation2 + $0x50] sm:$0xff]
        %v1161 = vld [vmem:[#allocation2 + $0x58] sm:$0xff]
        %v1162 = vld [vmem:[#allocation2 + $0x60] sm:$0xff]
        %v1163 = vld [vmem:[#allocation2 + $0x68] sm:$0xff]
        %v1164 = vld [vmem:[#allocation2 + $0x70] sm:$0xff]
        %v1165 = vld [vmem:[#allocation2 + $0x78] sm:$0xff]
        %v1166 = vld [vmem:[%s280] sm:$0x1]
        %v1168 = vlaneseq
        %v1169 = vshrl.u32 %v1168, 7
        %v1170 = vsub.s32 0, %v1169
        %v1171 = vrot.slane %v1166, %v1170
        %v1173 = vadd.f32 %v1150, %v1171
        %v1174 = vadd.f32 %v1151, %v1171
        %v1175 = vadd.f32 %v1152, %v1171
        %v1176 = vadd.f32 %v1153, %v1171
        %v1177 = vadd.f32 %v1154, %v1171
        %v1178 = vadd.f32 %v1155, %v1171
        %v1179 = vadd.f32 %v1156, %v1171
        %v1180 = vadd.f32 %v1157, %v1171
        %v1181 = vadd.f32 %v1158, %v1171
        %v1182 = vadd.f32 %v1159, %v1171
        %v1183 = vadd.f32 %v1160, %v1171
        %v1184 = vadd.f32 %v1161, %v1171
        %v1185 = vadd.f32 %v1162, %v1171
        %v1186 = vadd.f32 %v1163, %v1171
        %v1187 = vadd.f32 %v1164, %v1171
        %v1188 = vadd.f32 %v1165, %v1171
        %v1189 = vmax.f32 %v1173, 0.0
        %v1190 = vmax.f32 %v1174, 0.0
        %v1191 = vmax.f32 %v1175, 0.0
        %v1192 = vmax.f32 %v1176, 0.0
        %v1193 = vmax.f32 %v1177, 0.0
        %v1194 = vmax.f32 %v1178, 0.0
        %v1195 = vmax.f32 %v1179, 0.0
        %v1196 = vmax.f32 %v1180, 0.0
        %v1197 = vmax.f32 %v1181, 0.0
        %v1198 = vmax.f32 %v1182, 0.0
        %v1199 = vmax.f32 %v1183, 0.0
        %v1200 = vmax.f32 %v1184, 0.0
        %v1201 = vmax.f32 %v1185, 0.0
        %v1202 = vmax.f32 %v1186, 0.0
        %v1203 = vmax.f32 %v1187, 0.0
        %v1204 = vmax.f32 %v1188, 0.0
        %v1205 = vpack.c.bf16 %v1190, %v1189
        %v1206 = vpack.c.bf16 %v1192, %v1191
        %v1207 = vpack.c.bf16 %v1194, %v1193
        %v1208 = vpack.c.bf16 %v1196, %v1195
        %v1209 = vpack.c.bf16 %v1198, %v1197
        %v1210 = vpack.c.bf16 %v1200, %v1199
        %v1211 = vpack.c.bf16 %v1202, %v1201
        %v1212 = vpack.c.bf16 %v1204, %v1203
        %v1221 = vunpack.c.l.b16 %v1205
        %v1222 = vunpack.c.h.b16 %v1205
        %v1223 = vunpack.c.l.b16 %v1206
        %v1224 = vunpack.c.h.b16 %v1206
        %v1225 = vunpack.c.l.b16 %v1207
        %v1226 = vunpack.c.h.b16 %v1207
        %v1227 = vunpack.c.l.b16 %v1208
        %v1228 = vunpack.c.h.b16 %v1208
        %v1229 = vunpack.c.l.b16 %v1209
        %v1230 = vunpack.c.h.b16 %v1209
        %v1231 = vunpack.c.l.b16 %v1210
        %v1232 = vunpack.c.h.b16 %v1210
        %v1233 = vunpack.c.l.b16 %v1211
        %v1234 = vunpack.c.h.b16 %v1211
        %v1235 = vunpack.c.l.b16 %v1212
        %v1236 = vunpack.c.h.b16 %v1212
        %v1237 = vpack.c.b16 %v1221, %v1221
        %v1238 = vpack.c.b16 %v1222, %v1222
        %v1239 = vpack.c.b16 %v1223, %v1223
        %v1240 = vpack.c.b16 %v1224, %v1224
        %v1241 = vpack.c.b16 %v1225, %v1225
        %v1242 = vpack.c.b16 %v1226, %v1226
        %v1243 = vpack.c.b16 %v1227, %v1227
        %v1244 = vpack.c.b16 %v1228, %v1228
        %v1245 = vpack.c.b16 %v1229, %v1229
        %v1246 = vpack.c.b16 %v1230, %v1230
        %v1247 = vpack.c.b16 %v1231, %v1231
        %v1248 = vpack.c.b16 %v1232, %v1232
        %v1249 = vpack.c.b16 %v1233, %v1233
        %v1250 = vpack.c.b16 %v1234, %v1234
        %v1251 = vpack.c.b16 %v1235, %v1235
        %v1252 = vpack.c.b16 %v1236, %v1236
        %1269 = vst [vmem:[%s290] sm:$0xf] %v1237
        %1270 = vst [vmem:[%s290 + $0x4] sm:$0xf] %v1238
        %1271 = vst [vmem:[%s290 + $0x8] sm:$0xf] %v1239
        %1272 = vst [vmem:[%s290 + $0xc] sm:$0xf] %v1240
        %1273 = vst [vmem:[%s290 + $0x10] sm:$0xf] %v1241
        %1274 = vst [vmem:[%s290 + $0x14] sm:$0xf] %v1242
        %1275 = vst [vmem:[%s290 + $0x18] sm:$0xf] %v1243
        %1276 = vst [vmem:[%s290 + $0x1c] sm:$0xf] %v1244
        %1277 = vst [vmem:[%s290 + $0x20] sm:$0xf] %v1245
        %1278 = vst [vmem:[%s290 + $0x24] sm:$0xf] %v1246
        %1279 = vst [vmem:[%s290 + $0x28] sm:$0xf] %v1247
        %1280 = vst [vmem:[%s290 + $0x2c] sm:$0xf] %v1248
        %1281 = vst [vmem:[%s290 + $0x30] sm:$0xf] %v1249
        %1282 = vst [vmem:[%s290 + $0x34] sm:$0xf] %v1250
        %1283 = vst [vmem:[%s290 + $0x38] sm:$0xf] %v1251
        %1284 = vst [vmem:[%s290 + $0x3c] sm:$0xf] %v1252
      $region40: #{conv_block_forward.1} parent=31 // pred_fallthru
        _
      %s1285 = smul.u32 %s20, 2
      %s1286 = sadd.s32 %s1285, %s21
      %s1287 = smul.u32 16, %s1286
      %p1288 = scmp.lt.s32.totalorder %s1287, 63
      %s1289 = scalar_select %p1288, %s1287, 63
      %p1290 = scmp.lt.s32.totalorder %s22, 0
      %s1291 = scalar_select %p1290, %s22, 0
      %s1292 = sadd.s32 %s1291, %s1289
      %s1293 = smul.addr %s1292, 4
      %s1294 = scalar_lea.vmem %s3, %s1293
      // Predicated region
      $region41: #{conv_block_forward.1} parent=31 // pred_check
        %p1295 = pneg %p150
      $region42: #{conv_block_forward.1} parent=31 // pred_check_branch
        %1297 = sbr.rel (%p1295) target = $region44
      $region43: #{conv_block_forward.1} parent=31 // pred_region
        %s1298 = smul.u32 %s20, 2
        %s1299 = sadd.s32 %s1298, %s21
        %s1300 = smul.u32 16, %s1299
      $region44: #{conv_block_forward.1} parent=31 // pred_fallthru
        _
    $region32: #{conv_block_forward.1} parent=5 // pred_fallthru
      _
    %p1301 = scmp.le.s32.totalorder 2, %s9
    // Predicated region
    $region45: #{conv_block_forward.1} parent=5 // pred_check
      %p1302 = pneg %p1301
    $region46: #{conv_block_forward.1} parent=5 // pred_check_branch
      %1304 = sbr.rel (%p1302) target = $region48
    $region47: #{conv_block_forward.1} parent=5 // pred_region
      %s1305 = ssub.s32 %s9, 2
      // Predicated region
      $region49: #{conv_block_forward.1} parent=47 // pred_check
        %p1306 = pneg %p156
      $region50: #{conv_block_forward.1} parent=47 // pred_check_branch
        %1308 = sbr.rel (%p1306) target = $region52
      $region51: #{conv_block_forward.1} parent=47 // pred_region
        %s1309 = smul.u32 %s24, 2
        %s1310 = sadd.s32 %s1309, %s25
        %s1311 = smul.u32 16, %s1310
        %p1312 = scmp.lt.s32.totalorder %s1311, 63
        %s1313 = scalar_select %p1312, %s1311, 63
        %p1314 = scmp.lt.s32.totalorder %s26, 0
        %s1315 = scalar_select %p1314, %s26, 0
        %s1316 = sadd.s32 %s1315, %s1313
        %s1317 = smul.addr %s1316, 4
        %s1318 = scalar_lea.vmem %s3, %s1317
      $region52: #{conv_block_forward.1} parent=47 // pred_fallthru
        _
    $region48: #{conv_block_forward.1} parent=5 // pred_fallthru
      _
  $region6: #{conv_block_forward.1} parent=0 // loop_footer
    %s13 = sadd.s32 1, %s9
  $region7: #{conv_block_forward.1} parent=0 // loop_footer_branch
    %8 = sbr.rel target = $region3
  $region8: #{conv_block_forward.1} parent=0 // loop_exit
    _

</llo_original>
